<compile_context>
chip_gen: v6e
topology: v6e:2x2x1
jax: 0.10.0
libtpu: 0.0.40
codegen_flags: <defaults>
</compile_context>

<pallas_src>
import jax
import jax.numpy as jnp
from jax.experimental import pallas as pl
from jax.experimental.pallas import tpu as pltpu  # noqa: F401  (TPU backend)


def _fused_model_kernel(sig_ref, inp_ref, state0_ref,
                        w1_ref, winp_ref, w2_ref, wfc_ref, bias_ref,
                        out_ref):
    f32 = jnp.float32
    sig = sig_ref[...]                       # (Bp, input_size)
    state0 = state0_ref[...]                 # (Bp, 2H) = [h0 | c0]
    H = state0.shape[1] // 2
    h0 = state0[:, :H]
    c0 = state0[:, H:]
    bias = bias_ref[...]                     # (3, BW): rows = b1, b2, b_fc(pad)
    out_sz = wfc_ref.shape[1]
    Bp = sig.shape[0]

    def lstm_gates_to_state(gates, c_prev):
        # Whole-vreg transcendentals (EUP), then static 32-lane gate slices.
        sg = jax.nn.sigmoid(gates)
        tg = jnp.tanh(gates)
        i_g = sg[:, 0 * H:1 * H]
        f_g = sg[:, 1 * H:2 * H]
        g_g = tg[:, 2 * H:3 * H]
        o_g = sg[:, 3 * H:4 * H]
        c_new = f_g * c_prev + i_g * g_g
        h_new = o_g * jnp.tanh(c_new)
        return h_new, c_new

    # Extra-input contribution, folded into the cell-1 bias row: (1,7)@(7,4H).
    inp_row = jnp.dot(inp_ref[...], winp_ref[...], preferred_element_type=f32)
    b1 = bias[0:1, :4 * H] + inp_row                       # (1, 4H)

    # Cell 1: single fused matmul over [signal | h0].
    x1 = jnp.concatenate([sig, h0], axis=1)                # (Bp, in+H)
    gates1 = jnp.dot(x1, w1_ref[...], preferred_element_type=f32) + b1
    h1, c1 = lstm_gates_to_state(gates1, c0)

    # ReLU, then Cell 2: input = relu(h1), state = (h1, c1); single fused dot.
    x2 = jnp.concatenate([jnp.maximum(h1, 0.0), h1], axis=1)   # (Bp, 2H)
    gates2 = (jnp.dot(x2, w2_ref[...], preferred_element_type=f32)
              + bias[1:2, :4 * H])
    h2, c2 = lstm_gates_to_state(gates2, c1)

    # Linear + stable LogSoftmax over the real output lanes only.
    logits = (jnp.dot(h2, wfc_ref[...], preferred_element_type=f32)
              + bias[2:3, :out_sz])
    m = jnp.max(logits, axis=1, keepdims=True)
    shifted = logits - m
    logp = shifted - jnp.log(jnp.sum(jnp.exp(shifted), axis=1, keepdims=True))

    # Pack all results into one lane-dense slab: [logp | h2 | c2 | zero pad].
    pad_w = out_ref.shape[1] - (out_sz + 2 * H)
    parts = [logp, h2, c2]
    if pad_w:
        parts.append(jnp.zeros((Bp, pad_w), f32))
    out_ref[...] = jnp.concatenate(parts, axis=1).astype(out_ref.dtype)


def prepare_params(params):
    """One-time prep: transpose/stack weights, combine & pack biases.
    Keep the result and reuse it across calls (hoisted off the hot path)."""
    f32 = jnp.float32
    H = params["w_hh1"].shape[1]
    in_sz = params["w_ih1"].shape[1] - 7
    out_sz = params["w_fc"].shape[0]

    wih1_t = jnp.transpose(params["w_ih1"]).astype(f32)        # (in+7, 4H)
    whh1_t = jnp.transpose(params["w_hh1"]).astype(f32)        # (H, 4H)
    W1 = jnp.concatenate([wih1_t[:in_sz], whh1_t], axis=0)     # (in+H, 4H)
    W_inp7 = wih1_t[in_sz:]                                    # (7, 4H)

    wih2_t = jnp.transpose(params["w_ih2"]).astype(f32)        # (H, 4H)
    whh2_t = jnp.transpose(params["w_hh2"]).astype(f32)        # (H, 4H)
    W2 = jnp.concatenate([wih2_t, whh2_t], axis=0)             # (2H, 4H)

    Wfc = jnp.transpose(params["w_fc"]).astype(f32)            # (H, out)

    b1 = (params["b_ih1"] + params["b_hh1"]).astype(f32)       # (4H,)
    b2 = (params["b_ih2"] + params["b_hh2"]).astype(f32)       # (4H,)
    bfc = params["b_fc"].astype(f32)                           # (out,)
    BW = ((max(4 * H, out_sz) + 127) // 128) * 128
    pad_row = lambda v: jnp.pad(v, (0, BW - v.shape[0]))
    bias_slab = jnp.stack([pad_row(b1), pad_row(b2), pad_row(bfc)], axis=0)

    return dict(W1=W1, W_inp7=W_inp7, W2=W2, Wfc=Wfc, bias_slab=bias_slab)


def model_forward(signal, inp, initstate, prepared):
    """signal: (1, B, input_size); inp: (1, 7); initstate: None or (hx, cx).
    Returns (log_probs (B, output_size), (hx, cx)) like the PyTorch module."""
    sig = jnp.squeeze(signal, axis=0).astype(jnp.float32)      # (B, input_size)
    B = sig.shape[0]
    H = prepared["W2"].shape[0] // 2
    out_sz = prepared["Wfc"].shape[1]

    # Pad batch to a multiple of 8 (sublane width) for unmasked rows.
    Bp = ((B + 7) // 8) * 8
    if Bp != B:
        sig = jnp.pad(sig, ((0, Bp - B), (0, 0)))

    if initstate is None:
        state0 = jnp.zeros((Bp, 2 * H), jnp.float32)           # allocated at Bp
    else:
        h0, c0 = initstate
        state0 = jnp.concatenate(
            [h0.astype(jnp.float32), c0.astype(jnp.float32)], axis=1)
        if Bp != B:
            state0 = jnp.pad(state0, ((0, Bp - B), (0, 0)))

    OUT_W = ((out_sz + 2 * H + 127) // 128) * 128              # lane-dense slab

    packed = pl.pallas_call(
        _fused_model_kernel,
        out_shape=jax.ShapeDtypeStruct((Bp, OUT_W), jnp.float32),
    )(sig, inp.astype(jnp.float32), state0,
      prepared["W1"], prepared["W_inp7"], prepared["W2"], prepared["Wfc"],
      prepared["bias_slab"])

    out = packed[:B, 0:out_sz]
    hx = packed[:B, out_sz:out_sz + H]
    cx = packed[:B, out_sz + H:out_sz + 2 * H]
    return out, (hx, cx)


def init_params(key, input_size, hidden_size, output_size):
    """PyTorch-style U(-1/sqrt(H), 1/sqrt(H)) init for both cells and the FC."""
    bound = 1.0 / (hidden_size ** 0.5)
    in1 = input_size + 7
    ks = jax.random.split(key, 10)
    u = lambda k, shape: jax.random.uniform(k, shape, jnp.float32, -bound, bound)
    return dict(
        w_ih1=u(ks[0], (4 * hidden_size, in1)),
        w_hh1=u(ks[1], (4 * hidden_size, hidden_size)),
        b_ih1=u(ks[2], (4 * hidden_size,)),
        b_hh1=u(ks[3], (4 * hidden_size,)),
        w_ih2=u(ks[4], (4 * hidden_size, hidden_size)),
        w_hh2=u(ks[5], (4 * hidden_size, hidden_size)),
        b_ih2=u(ks[6], (4 * hidden_size,)),
        b_hh2=u(ks[7], (4 * hidden_size,)),
        w_fc=u(ks[8], (output_size, hidden_size)),
        b_fc=u(ks[9], (output_size,)),
    )


def _reference_forward(signal, inp, initstate, params):
    """Pure-JAX reference matching the PyTorch module (for validation only)."""
    sig = jnp.squeeze(signal, axis=0)
    B = sig.shape[0]
    H = params["w_hh1"].shape[1]
    if initstate is None:
        hx = jnp.zeros((B, H), jnp.float32)
        cx = jnp.zeros((B, H), jnp.float32)
    else:
        hx, cx = initstate
    xc = jnp.concatenate([sig, jnp.broadcast_to(inp, (B, inp.shape[1]))], axis=1)

    def cell(x, h, c, wih, whh, bih, bhh):
        g = x @ wih.T + bih + h @ whh.T + bhh
        i = jax.nn.sigmoid(g[:, 0 * H:1 * H])
        f = jax.nn.sigmoid(g[:, 1 * H:2 * H])
        gg = jnp.tanh(g[:, 2 * H:3 * H])
        o = jax.nn.sigmoid(g[:, 3 * H:4 * H])
        c_new = f * c + i * gg
        return o * jnp.tanh(c_new), c_new

    hx, cx = cell(xc, hx, cx, params["w_ih1"], params["w_hh1"],
                  params["b_ih1"], params["b_hh1"])
    x = jnp.maximum(hx, 0.0)
    hx, cx = cell(x, hx, cx, params["w_ih2"], params["w_hh2"],
                  params["b_ih2"], params["b_hh2"])
    logits = hx @ params["w_fc"].T + params["b_fc"]
    return jax.nn.log_softmax(logits, axis=1), (hx, cx)


if __name__ == "__main__":
    BATCH, INPUT_SIZE, HIDDEN, OUTPUT_SIZE = 4, 16, 32, 16

    key = jax.random.PRNGKey(0)
    key, ks, ki = jax.random.split(key, 3)
    signal = jax.random.normal(ks, (1, BATCH, INPUT_SIZE), jnp.float32)
    extra_input = jax.random.normal(ki, (1, 7), jnp.float32)

    params = init_params(key, INPUT_SIZE, HIDDEN, OUTPUT_SIZE)
    prepared = prepare_params(params)          # one-time, off the hot path
    fwd = jax.jit(model_forward)

    # First call: initstate == None (zeros), as in the module.
    output, (hx, cx) = fwd(signal, extra_input, None, prepared)
    # Second call: feed the state back in (exercises the initstate path).
    output2, (hx2, cx2) = fwd(signal, extra_input, (hx, cx), prepared)
    jax.block_until_ready((output, hx, cx, output2, hx2, cx2))

    assert output.shape == (BATCH, OUTPUT_SIZE)
    assert hx.shape == (BATCH, HIDDEN) and cx.shape == (BATCH, HIDDEN)
    # log-softmax rows must exponentiate-sum to ~1
    assert bool(jnp.all(jnp.abs(jnp.sum(jnp.exp(output), axis=1) - 1.0) < 1e-4))

    # Validate against a pure-JAX reference of the PyTorch forward.
    ref_out, (ref_hx, ref_cx) = _reference_forward(signal, extra_input, None, params)
    ref_out2, (ref_hx2, ref_cx2) = _reference_forward(
        signal, extra_input, (ref_hx, ref_cx), params)
    assert jnp.allclose(output, ref_out, atol=1e-4, rtol=1e-4)
    assert jnp.allclose(hx, ref_hx, atol=1e-4, rtol=1e-4)
    assert jnp.allclose(cx, ref_cx, atol=1e-4, rtol=1e-4)
    assert jnp.allclose(output2, ref_out2, atol=1e-4, rtol=1e-4)
    assert jnp.allclose(hx2, ref_hx2, atol=1e-4, rtol=1e-4)
    assert jnp.allclose(cx2, ref_cx2, atol=1e-4, rtol=1e-4)

    print("KERNEL_OK")
</pallas_src>

<mosaic_0001>
module attributes {stable_mosaic.version = 11 : i64} {
  func.func @_fused_model_kernel(%arg0: memref<8x16xf32, #tpu.memory_space<vmem>>, %arg1: memref<1x7xf32, #tpu.memory_space<vmem>>, %arg2: memref<8x64xf32, #tpu.memory_space<vmem>>, %arg3: memref<48x128xf32, #tpu.memory_space<vmem>>, %arg4: memref<7x128xf32, #tpu.memory_space<vmem>>, %arg5: memref<64x128xf32, #tpu.memory_space<vmem>>, %arg6: memref<32x16xf32, #tpu.memory_space<vmem>>, %arg7: memref<3x128xf32, #tpu.memory_space<vmem>>, %arg8: memref<8x128xf32, #tpu.memory_space<vmem>>) attributes {dimension_semantics = [], scalar_prefetch = 0 : i64, scratch_operands = 0 : i64, tpu.core_type = #tpu.core_type<tc>} {
    %c0 = arith.constant 0 : index
    %c0_0 = arith.constant 0 : index
    %0 = vector.load %arg0[%c0, %c0_0] : memref<8x16xf32, #tpu.memory_space<vmem>>, vector<8x16xf32>
    %c0_1 = arith.constant 0 : index
    %c0_2 = arith.constant 0 : index
    %1 = vector.load %arg2[%c0_1, %c0_2] : memref<8x64xf32, #tpu.memory_space<vmem>>, vector<8x64xf32>
    %2 = vector.extract_strided_slice %1 {offsets = [0, 0], sizes = [8, 32], strides = [1, 1]} : vector<8x64xf32> to vector<8x32xf32>
    %3 = vector.extract_strided_slice %1 {offsets = [0, 32], sizes = [8, 32], strides = [1, 1]} : vector<8x64xf32> to vector<8x32xf32>
    %c0_3 = arith.constant 0 : index
    %c0_4 = arith.constant 0 : index
    %4 = vector.load %arg7[%c0_3, %c0_4] : memref<3x128xf32, #tpu.memory_space<vmem>>, vector<3x128xf32>
    %c0_5 = arith.constant 0 : index
    %c0_6 = arith.constant 0 : index
    %5 = vector.load %arg1[%c0_5, %c0_6] : memref<1x7xf32, #tpu.memory_space<vmem>>, vector<1x7xf32>
    %c0_7 = arith.constant 0 : index
    %c0_8 = arith.constant 0 : index
    %6 = vector.load %arg4[%c0_7, %c0_8] : memref<7x128xf32, #tpu.memory_space<vmem>>, vector<7x128xf32>
    %cst = arith.constant dense<0.000000e+00> : vector<1x128xf32>
    %7 = tpu.matmul %5, %6, %cst {dimension_numbers = #tpu.dot_dimension_numbers<[1], [0], [0], [1], [0, 0, 1, 1], [], []>} : vector<1x7xf32>, vector<7x128xf32>, vector<1x128xf32> -> vector<1x128xf32>
    %8 = vector.extract_strided_slice %4 {offsets = [0, 0], sizes = [1, 128], strides = [1, 1]} : vector<3x128xf32> to vector<1x128xf32>
    %9 = arith.addf %8, %7 : vector<1x128xf32>
    %10 = tpu.concatenate %0, %2 in 1 : vector<8x16xf32>, vector<8x32xf32> -> vector<8x48xf32>
    %c0_9 = arith.constant 0 : index
    %c0_10 = arith.constant 0 : index
    %11 = vector.load %arg3[%c0_9, %c0_10] : memref<48x128xf32, #tpu.memory_space<vmem>>, vector<48x128xf32>
    %cst_11 = arith.constant dense<0.000000e+00> : vector<8x128xf32>
    %12 = tpu.matmul %10, %11, %cst_11 {dimension_numbers = #tpu.dot_dimension_numbers<[1], [0], [0], [1], [0, 0, 1, 1], [], []>} : vector<8x48xf32>, vector<48x128xf32>, vector<8x128xf32> -> vector<8x128xf32>
    %13 = vector.broadcast %9 : vector<1x128xf32> to vector<8x128xf32>
    %14 = arith.addf %12, %13 : vector<8x128xf32>
    %15 = arith.negf %14 : vector<8x128xf32>
    %16 = math.exp %15 : vector<8x128xf32>
    %cst_12 = arith.constant 1.000000e+00 : f32
    %17 = vector.broadcast %cst_12 : f32 to vector<8x128xf32>
    %18 = arith.addf %17, %16 : vector<8x128xf32>
    %19 = arith.divf %17, %18 : vector<8x128xf32>
    %20 = math.tanh %14 : vector<8x128xf32>
    %21 = vector.extract_strided_slice %19 {offsets = [0, 0], sizes = [8, 32], strides = [1, 1]} : vector<8x128xf32> to vector<8x32xf32>
    %22 = vector.extract_strided_slice %19 {offsets = [0, 32], sizes = [8, 32], strides = [1, 1]} : vector<8x128xf32> to vector<8x32xf32>
    %23 = vector.extract_strided_slice %20 {offsets = [0, 64], sizes = [8, 32], strides = [1, 1]} : vector<8x128xf32> to vector<8x32xf32>
    %24 = vector.extract_strided_slice %19 {offsets = [0, 96], sizes = [8, 32], strides = [1, 1]} : vector<8x128xf32> to vector<8x32xf32>
    %25 = arith.mulf %22, %3 : vector<8x32xf32>
    %26 = arith.mulf %21, %23 : vector<8x32xf32>
    %27 = arith.addf %25, %26 : vector<8x32xf32>
    %28 = math.tanh %27 : vector<8x32xf32>
    %29 = arith.mulf %24, %28 : vector<8x32xf32>
    %cst_13 = arith.constant 0.000000e+00 : f32
    %30 = vector.broadcast %cst_13 : f32 to vector<8x32xf32>
    %31 = arith.maximumf %29, %30 : vector<8x32xf32>
    %32 = tpu.concatenate %31, %29 in 1 : vector<8x32xf32>, vector<8x32xf32> -> vector<8x64xf32>
    %c0_14 = arith.constant 0 : index
    %c0_15 = arith.constant 0 : index
    %33 = vector.load %arg5[%c0_14, %c0_15] : memref<64x128xf32, #tpu.memory_space<vmem>>, vector<64x128xf32>
    %cst_16 = arith.constant dense<0.000000e+00> : vector<8x128xf32>
    %34 = tpu.matmul %32, %33, %cst_16 {dimension_numbers = #tpu.dot_dimension_numbers<[1], [0], [0], [1], [0, 0, 1, 1], [], []>} : vector<8x64xf32>, vector<64x128xf32>, vector<8x128xf32> -> vector<8x128xf32>
    %35 = vector.extract_strided_slice %4 {offsets = [1, 0], sizes = [1, 128], strides = [1, 1]} : vector<3x128xf32> to vector<1x128xf32>
    %36 = vector.broadcast %35 : vector<1x128xf32> to vector<8x128xf32>
    %37 = arith.addf %34, %36 : vector<8x128xf32>
    %38 = arith.negf %37 : vector<8x128xf32>
    %39 = math.exp %38 : vector<8x128xf32>
    %cst_17 = arith.constant 1.000000e+00 : f32
    %40 = vector.broadcast %cst_17 : f32 to vector<8x128xf32>
    %41 = arith.addf %40, %39 : vector<8x128xf32>
    %42 = arith.divf %40, %41 : vector<8x128xf32>
    %43 = math.tanh %37 : vector<8x128xf32>
    %44 = vector.extract_strided_slice %42 {offsets = [0, 0], sizes = [8, 32], strides = [1, 1]} : vector<8x128xf32> to vector<8x32xf32>
    %45 = vector.extract_strided_slice %42 {offsets = [0, 32], sizes = [8, 32], strides = [1, 1]} : vector<8x128xf32> to vector<8x32xf32>
    %46 = vector.extract_strided_slice %43 {offsets = [0, 64], sizes = [8, 32], strides = [1, 1]} : vector<8x128xf32> to vector<8x32xf32>
    %47 = vector.extract_strided_slice %42 {offsets = [0, 96], sizes = [8, 32], strides = [1, 1]} : vector<8x128xf32> to vector<8x32xf32>
    %48 = arith.mulf %45, %27 : vector<8x32xf32>
    %49 = arith.mulf %44, %46 : vector<8x32xf32>
    %50 = arith.addf %48, %49 : vector<8x32xf32>
    %51 = math.tanh %50 : vector<8x32xf32>
    %52 = arith.mulf %47, %51 : vector<8x32xf32>
    %c0_18 = arith.constant 0 : index
    %c0_19 = arith.constant 0 : index
    %53 = vector.load %arg6[%c0_18, %c0_19] : memref<32x16xf32, #tpu.memory_space<vmem>>, vector<32x16xf32>
    %cst_20 = arith.constant dense<0.000000e+00> : vector<8x16xf32>
    %54 = tpu.matmul %52, %53, %cst_20 {dimension_numbers = #tpu.dot_dimension_numbers<[1], [0], [0], [1], [0, 0, 1, 1], [], []>} : vector<8x32xf32>, vector<32x16xf32>, vector<8x16xf32> -> vector<8x16xf32>
    %55 = vector.extract_strided_slice %4 {offsets = [2, 0], sizes = [1, 16], strides = [1, 1]} : vector<3x128xf32> to vector<1x16xf32>
    %56 = vector.broadcast %55 : vector<1x16xf32> to vector<8x16xf32>
    %57 = arith.addf %54, %56 : vector<8x16xf32>
    %cst_21 = arith.constant dense<0xFF800000> : vector<8xf32>
    %58 = vector.multi_reduction <maximumf>, %57, %cst_21 [1] : vector<8x16xf32> to vector<8xf32>
    %59 = vector.shape_cast %58 : vector<8xf32> to vector<8x1xf32>
    %60 = vector.broadcast %59 : vector<8x1xf32> to vector<8x16xf32>
    %61 = arith.subf %57, %60 : vector<8x16xf32>
    %62 = math.exp %61 : vector<8x16xf32>
    %cst_22 = arith.constant dense<0.000000e+00> : vector<8xf32>
    %63 = vector.multi_reduction <add>, %62, %cst_22 [1] : vector<8x16xf32> to vector<8xf32>
    %64 = vector.shape_cast %63 : vector<8xf32> to vector<8x1xf32>
    %65 = math.log %64 : vector<8x1xf32>
    %66 = vector.broadcast %65 : vector<8x1xf32> to vector<8x16xf32>
    %67 = arith.subf %61, %66 : vector<8x16xf32>
    %cst_23 = arith.constant 0.000000e+00 : f32
    %68 = vector.broadcast %cst_23 : f32 to vector<8x48xf32>
    %69 = tpu.concatenate %67, %52, %50, %68 in 1 : vector<8x16xf32>, vector<8x32xf32>, vector<8x32xf32>, vector<8x48xf32> -> vector<8x128xf32>
    %c0_24 = arith.constant 0 : index
    %c0_25 = arith.constant 0 : index
    %70 = vector.load %arg8[%c0_24, %c0_25] : memref<8x128xf32, #tpu.memory_space<vmem>>, vector<8x128xf32>
    tpu.vector_store %arg8[%c0_24, %c0_25], %69 {strides = array<i32>} : memref<8x128xf32, #tpu.memory_space<vmem>>, vector<8x128xf32>,
    return
  }
}

</mosaic_0001>

<llo_original>
// kernel: model_forward.1
$region0: #{model_forward.1}
  #allocation0 [shape = 'u32[]', space=smem, size = 0x4, offset = 0x4, fixed_abs, tag = 'smem constant byte address 0x4 - core index']
  #allocation1 [shape = 'u32[144,128]{1,0:T(1,128)}', space=vmem, size = 0x12000, scoped, tag = 'internal scratch']
  %s0 = inlined_call_operand.vmem [shape: f32[8,16], index: 0, kind: input, shape index: {}]
  %s1 = inlined_call_operand.hbm [shape: f32[1,7], index: 1, kind: input, shape index: {}]
  %s2 = inlined_call_operand.vmem [shape: f32[8,64], index: 2, kind: input, shape index: {}]
  %s3 = inlined_call_operand.hbm [shape: f32[48,128], index: 3, kind: input, shape index: {}]
  %s4 = inlined_call_operand.hbm [shape: f32[7,128], index: 4, kind: input, shape index: {}]
  %s5 = inlined_call_operand.vmem [shape: f32[64,128], index: 5, kind: input, shape index: {}]
  %s6 = inlined_call_operand.vmem [shape: f32[32,16], index: 6, kind: input, shape index: {}]
  %s7 = inlined_call_operand.hbm [shape: f32[3,128], index: 7, kind: input, shape index: {}]
  %s8 = inlined_call_operand.vmem [shape: f32[8,128], index: 8, kind: output, shape index: {}]
  %s9 = sld [smem:[#allocation0]]
  $region58: #{model_forward.1} parent=0
    _
  %s11 = ssub.s32 1, %s9
  %s12 = scalar_select 0, %s11, %s9
  $region1: #{model_forward.1} parent=0
    #allocation2 [shape = 'u8[512]{0}', space=vmem, size = 0x400, scoped, tag = 'input window, operand 1, single buffered']
    #allocation3 [shape = 's32[1]{0}', space=sflag, size = 0x4, scoped, tag = 'scoped memory for model_forward.1']
    #allocation4 [shape = 'u8[24576]{0}', space=vmem, size = 0x6000, scoped, tag = 'input window, operand 3, single buffered']
    #allocation5 [shape = 's32[1]{0}', space=sflag, size = 0x4, scoped, tag = 'scoped memory for model_forward.1']
    #allocation6 [shape = 'u8[4096]{0}', space=vmem, size = 0x1000, scoped, tag = 'input window, operand 4, single buffered']
    #allocation7 [shape = 'u8[2048]{0}', space=vmem, size = 0x800, scoped, tag = 'input window, operand 7, single buffered']
    #allocation8 [shape = 's32[1]{0}', space=sflag, size = 0x4, scoped, tag = 'scoped memory for model_forward.1']
    %13 = vsyncpa [#allocation3], 0
    %14 = vsyncpa [#allocation5], 0
    %15 = vsyncpa [#allocation8], 0
    // Predicated region
    $region2: #{model_forward.1} parent=1 // pred_check
      _
    $region3: #{model_forward.1} parent=1 // pred_check_branch
      %17 = sbr.rel (0) target = $region5
    $region4: #{model_forward.1} parent=1 // pred_region
      _
    $region5: #{model_forward.1} parent=1 // pred_fallthru
      _
    // Predicated region
    $region6: #{model_forward.1} parent=1 // pred_check
      _
    $region7: #{model_forward.1} parent=1 // pred_check_branch
      %19 = sbr.rel (0) target = $region9
    $region8: #{model_forward.1} parent=1 // pred_region
      %s21 = ssub.s32 16, 16
      %22 = vsyncadd [#allocation3], %s21
      %s24 = sshll.u32 [#allocation2], 4
      %s25 = int_to_ptr.vmem [resolvable:$true] %s24
      %27 = dma.hbm_to_vmem [thread:$0]  %s1, 16, %s25, [#allocation3]
    $region9: #{model_forward.1} parent=1 // pred_fallthru
      _
    // Predicated region
    $region10: #{model_forward.1} parent=1 // pred_check
      _
    $region11: #{model_forward.1} parent=1 // pred_check_branch
      %29 = sbr.rel (0) target = $region13
    $region12: #{model_forward.1} parent=1 // pred_region
      _
    $region13: #{model_forward.1} parent=1 // pred_fallthru
      _
    // Predicated region
    $region14: #{model_forward.1} parent=1 // pred_check
      _
    $region15: #{model_forward.1} parent=1 // pred_check_branch
      %31 = sbr.rel (0) target = $region17
    $region16: #{model_forward.1} parent=1 // pred_region
      %s33 = ssub.s32 768, 768
      %34 = vsyncadd [#allocation5], %s33
      %s35 = sshll.u32 [#allocation4], 4
      %s36 = int_to_ptr.vmem [resolvable:$true] %s35
      %41 = dma.hbm_to_vmem [thread:$0]  %s3, 768, %s36, [#allocation5], 128, 128, 8
    $region17: #{model_forward.1} parent=1 // pred_fallthru
      _
    // Predicated region
    $region18: #{model_forward.1} parent=1 // pred_check
      _
    $region19: #{model_forward.1} parent=1 // pred_check_branch
      %43 = sbr.rel (0) target = $region21
    $region20: #{model_forward.1} parent=1 // pred_region
      %s45 = ssub.s32 128, 128
      %46 = vsyncadd [#allocation5], %s45
      %s48 = sshll.u32 [#allocation6], 4
      %s49 = int_to_ptr.vmem [resolvable:$true] %s48
      %51 = dma.hbm_to_vmem [thread:$0]  %s4, 128, %s49, [#allocation5]
    $region21: #{model_forward.1} parent=1 // pred_fallthru
      _
    // Predicated region
    $region22: #{model_forward.1} parent=1 // pred_check
      _
    $region23: #{model_forward.1} parent=1 // pred_check_branch
      %53 = sbr.rel (0) target = $region25
    $region24: #{model_forward.1} parent=1 // pred_region
      _
    $region25: #{model_forward.1} parent=1 // pred_fallthru
      _
    // Predicated region
    $region26: #{model_forward.1} parent=1 // pred_check
      _
    $region27: #{model_forward.1} parent=1 // pred_check_branch
      %55 = sbr.rel (0) target = $region29
    $region28: #{model_forward.1} parent=1 // pred_region
      _
    $region29: #{model_forward.1} parent=1 // pred_fallthru
      _
    // Predicated region
    $region30: #{model_forward.1} parent=1 // pred_check
      _
    $region31: #{model_forward.1} parent=1 // pred_check_branch
      %57 = sbr.rel (0) target = $region33
    $region32: #{model_forward.1} parent=1 // pred_region
      %s59 = ssub.s32 64, 64
      %60 = vsyncadd [#allocation8], %s59
      %s62 = sshll.u32 [#allocation7], 4
      %s63 = int_to_ptr.vmem [resolvable:$true] %s62
      %65 = dma.hbm_to_vmem [thread:$0]  %s7, 64, %s63, [#allocation8]
    $region33: #{model_forward.1} parent=1 // pred_fallthru
      _
    // Predicated region
    $region34: #{model_forward.1} parent=1 // pred_check
      _
    $region35: #{model_forward.1} parent=1 // pred_check_branch
      %67 = sbr.rel (0) target = $region37
    $region36: #{model_forward.1} parent=1 // pred_region
      %68 = dma.done [#allocation3], 16
    $region37: #{model_forward.1} parent=1 // pred_fallthru
      _
    // Predicated region
    $region38: #{model_forward.1} parent=1 // pred_check
      _
    $region39: #{model_forward.1} parent=1 // pred_check_branch
      %70 = sbr.rel (0) target = $region41
    $region40: #{model_forward.1} parent=1 // pred_region
      %71 = dma.done [#allocation5], 768
    $region41: #{model_forward.1} parent=1 // pred_fallthru
      _
    // Predicated region
    $region42: #{model_forward.1} parent=1 // pred_check
      _
    $region43: #{model_forward.1} parent=1 // pred_check_branch
      %73 = sbr.rel (0) target = $region45
    $region44: #{model_forward.1} parent=1 // pred_region
      %74 = dma.done [#allocation5], 128
    $region45: #{model_forward.1} parent=1 // pred_fallthru
      _
    // Predicated region
    $region46: #{model_forward.1} parent=1 // pred_check
      _
    $region47: #{model_forward.1} parent=1 // pred_check_branch
      %76 = sbr.rel (0) target = $region49
    $region48: #{model_forward.1} parent=1 // pred_region
      %77 = dma.done [#allocation8], 64
    $region49: #{model_forward.1} parent=1 // pred_fallthru
      _
    %v78 = vld [vmem:[%s0] sm:$0xff]
    %v79 = vld [vmem:[%s2] sm:$0xff]
    %v80 = vld [vmem:[#allocation7] sm:$0x7]
    %v81 = vld [vmem:[#allocation2] sm:$0x1]
    %v82 = vld [vmem:[#allocation6] sm:$0x7f]
    %vm83 = vcmask 56320
    %v85 = vsel %vm83, %v81, 0
    %vm87 = vcmask 1046528
    %v89 = vsel %vm87, %v82, 0
    %91 = vmatprep.subr.mxu0 0.0
    %92 = vmatpush1.msra.mxu0 0.0
    %93 = vmatprep.subr.mxu0 0.0
    %94 = vmatpush1.msra.mxu0 0.0
    %95 = vmatprep.subr.mxu0 0.0
    %96 = vmatpush1.msra.mxu0 0.0
    %97 = vmatprep.subr.mxu0 0.0
    %98 = vmatpush1.msra.mxu0 0.0
    %99 = vmatprep.subr.mxu0 0.0
    %100 = vmatpush1.msra.mxu0 0.0
    %101 = vmatprep.subr.mxu0 0.0
    %102 = vmatpush1.msra.mxu0 0.0
    %103 = vmatprep.subr.mxu0 0.0
    %104 = vmatpush1.msra.mxu0 0.0
    %105 = vmatprep.subr.mxu0 0.0
    %106 = vmatpush1.msra.mxu0 0.0
    %107 = vmatprep.subr.mxu0 0.0
    %108 = vmatpush1.msra.mxu0 0.0
    %109 = vmatprep.subr.mxu0 0.0
    %110 = vmatpush1.msra.mxu0 0.0
    %111 = vmatprep.subr.mxu0 0.0
    %112 = vmatpush1.msra.mxu0 0.0
    %113 = vmatprep.subr.mxu0 0.0
    %114 = vmatpush1.msra.mxu0 0.0
    %115 = vmatprep.subr.mxu0 0.0
    %116 = vmatpush1.msra.mxu0 0.0
    %117 = vmatprep.subr.mxu0 0.0
    %118 = vmatpush1.msra.mxu0 0.0
    %119 = vmatprep.subr.mxu0 0.0
    %120 = vmatpush1.msra.mxu0 0.0
    %121 = vmatprep.subr.mxu0 0.0
    %122 = vmatpush1.msra.mxu0 %v89
    %123 = vmatprep.subr.mxu0 0.0
    %124 = vmatpush2.msra.mxu0 0.0
    %125 = vmatprep.subr.mxu0 0.0
    %126 = vmatpush2.msra.mxu0 0.0
    %127 = vmatprep.subr.mxu0 0.0
    %128 = vmatpush2.msra.mxu0 0.0
    %129 = vmatprep.subr.mxu0 0.0
    %130 = vmatpush2.msra.mxu0 0.0
    %131 = vmatprep.subr.mxu0 0.0
    %132 = vmatpush2.msra.mxu0 0.0
    %133 = vmatprep.subr.mxu0 0.0
    %134 = vmatpush2.msra.mxu0 0.0
    %135 = vmatprep.subr.mxu0 0.0
    %136 = vmatpush2.msra.mxu0 0.0
    %137 = vmatprep.subr.mxu0 0.0
    %138 = vmatpush2.msra.mxu0 0.0
    %139 = vmatprep.subr.mxu0 0.0
    %140 = vmatpush2.msra.mxu0 0.0
    %141 = vmatprep.subr.mxu0 0.0
    %142 = vmatpush2.msra.mxu0 0.0
    %143 = vmatprep.subr.mxu0 0.0
    %144 = vmatpush2.msra.mxu0 0.0
    %145 = vmatprep.subr.mxu0 0.0
    %146 = vmatpush2.msra.mxu0 0.0
    %147 = vmatprep.subr.mxu0 0.0
    %148 = vmatpush2.msra.mxu0 0.0
    %149 = vmatprep.subr.mxu0 0.0
    %150 = vmatpush2.msra.mxu0 0.0
    %151 = vmatprep.subr.mxu0 0.0
    %152 = vmatpush2.msra.mxu0 0.0
    %153 = vmatprep.subr.mxu0 0.0
    %154 = vmatpush2.msra.mxu0 0.0
    %155 = vmatprep.mubr.f32.mxu0 0.0
    %156 = vmatmul.mubr.f32.gmra.mxu0 %v85
    %v157 = vpop.f32.mrf.mxu0
    %v158 = vadd.f32 0.0, %v157
    %v159 = vpop.f32.mrf.mxu0
    %160 = vdwg.mxu0
    %v161 = vadd.f32 %v80, %v158
    %163 = vrot.lane.b32.xlu0 %v79, 16
    %v164 = vpop.permute.xlu0 %163
    %vm166 = vcmask 130048
    %v167 = vsel %vm166, %v78, %v164
    %v168 = vld [vmem:[#allocation4] sm:$0xff]
    %v169 = vld [vmem:[#allocation4 + $0x8] sm:$0xff]
    %v170 = vld [vmem:[#allocation4 + $0x10] sm:$0xff]
    %v171 = vld [vmem:[#allocation4 + $0x18] sm:$0xff]
    %v172 = vld [vmem:[#allocation4 + $0x20] sm:$0xff]
    %v173 = vld [vmem:[#allocation4 + $0x28] sm:$0xff]
    %v174 = vlaneseq
    %v175 = vshrl.u32 %v174, 7
    %v176 = vsub.s32 0, %v175
    %v177 = vrot.slane %v161, %v176
    %vm178 = vcmask 392192
    %v180 = vsel %vm178, %v167, 0
    %182 = vmatprep.subr.mxu0 0.0
    %183 = vmatpush1.msra.mxu0 0.0
    %184 = vmatprep.subr.mxu0 0.0
    %185 = vmatpush1.msra.mxu0 0.0
    %186 = vmatprep.subr.mxu0 0.0
    %187 = vmatpush1.msra.mxu0 0.0
    %188 = vmatprep.subr.mxu0 0.0
    %189 = vmatpush1.msra.mxu0 0.0
    %190 = vmatprep.subr.mxu0 0.0
    %191 = vmatpush1.msra.mxu0 0.0
    %192 = vmatprep.subr.mxu0 0.0
    %193 = vmatpush1.msra.mxu0 0.0
    %194 = vmatprep.subr.mxu0 0.0
    %195 = vmatpush1.msra.mxu0 0.0
    %196 = vmatprep.subr.mxu0 0.0
    %197 = vmatpush1.msra.mxu0 0.0
    %198 = vmatprep.subr.mxu0 0.0
    %199 = vmatpush1.msra.mxu0 0.0
    %200 = vmatprep.subr.mxu0 0.0
    %201 = vmatpush1.msra.mxu0 0.0
    %202 = vmatprep.subr.mxu0 0.0
    %203 = vmatpush1.msra.mxu0 %v173
    %204 = vmatprep.subr.mxu0 0.0
    %205 = vmatpush1.msra.mxu0 %v172
    %206 = vmatprep.subr.mxu0 0.0
    %207 = vmatpush1.msra.mxu0 %v171
    %208 = vmatprep.subr.mxu0 0.0
    %209 = vmatpush1.msra.mxu0 %v170
    %210 = vmatprep.subr.mxu0 0.0
    %211 = vmatpush1.msra.mxu0 %v169
    %212 = vmatprep.subr.mxu0 0.0
    %213 = vmatpush1.msra.mxu0 %v168
    %214 = vmatprep.subr.mxu0 0.0
    %215 = vmatpush2.msra.mxu0 0.0
    %216 = vmatprep.subr.mxu0 0.0
    %217 = vmatpush2.msra.mxu0 0.0
    %218 = vmatprep.subr.mxu0 0.0
    %219 = vmatpush2.msra.mxu0 0.0
    %220 = vmatprep.subr.mxu0 0.0
    %221 = vmatpush2.msra.mxu0 0.0
    %222 = vmatprep.subr.mxu0 0.0
    %223 = vmatpush2.msra.mxu0 0.0
    %224 = vmatprep.subr.mxu0 0.0
    %225 = vmatpush2.msra.mxu0 0.0
    %226 = vmatprep.subr.mxu0 0.0
    %227 = vmatpush2.msra.mxu0 0.0
    %228 = vmatprep.subr.mxu0 0.0
    %229 = vmatpush2.msra.mxu0 0.0
    %230 = vmatprep.subr.mxu0 0.0
    %231 = vmatpush2.msra.mxu0 0.0
    %232 = vmatprep.subr.mxu0 0.0
    %233 = vmatpush2.msra.mxu0 0.0
    %234 = vmatprep.subr.mxu0 0.0
    %235 = vmatpush2.msra.mxu0 0.0
    %236 = vmatprep.subr.mxu0 0.0
    %237 = vmatpush2.msra.mxu0 0.0
    %238 = vmatprep.subr.mxu0 0.0
    %239 = vmatpush2.msra.mxu0 0.0
    %240 = vmatprep.subr.mxu0 0.0
    %241 = vmatpush2.msra.mxu0 0.0
    %242 = vmatprep.subr.mxu0 0.0
    %243 = vmatpush2.msra.mxu0 0.0
    %244 = vmatprep.subr.mxu0 0.0
    %245 = vmatpush2.msra.mxu0 0.0
    %246 = vmatprep.mubr.f32.mxu0 0.0
    %247 = vmatmul.mubr.f32.gmra.mxu0 %v180
    %v248 = vpop.f32.mrf.mxu0
    %v249 = vadd.f32 %v177, %v248
    %v250 = vpop.f32.mrf.mxu0
    %251 = vdwg.mxu0
    %v252 = vxor.u32 %v249, 2147483648
    %v253 = vmul.f32 %v252, 1.442695
    %v254 = vpow.pop %v253
    %v255 = vadd.f32 %v254, 1.0
    %v256 = vrcp.pop %v255
    %v257 = vmul.f32 1.0, %v256
    %v258 = vtanh.pop %v249
    %v259 = vmul.f32 %v257, %v79
    %261 = vrot.lane.b32.xlu0 %v258, 64
    %v262 = vpop.permute.xlu0 %261
    %v264 = vmul.f32 %v257, %v262
    %266 = vrot.lane.b32.xlu0 %v264, 32
    %v267 = vpop.permute.xlu0 %266
    %v269 = vadd.f32 %v259, %v267
    %v270 = vtanh.pop %v269
    %272 = vrot.lane.b32.xlu0 %v270, 64
    %v273 = vpop.permute.xlu0 %272
    %v275 = vmul.f32 %v257, %v273
    %v276 = vmax.f32 %v275, 0.0
    %278 = vrot.lane.b32.xlu0 %v276, 32
    %v279 = vpop.permute.xlu0 %278
    %282 = vrot.lane.b32.xlu0 %v275, 64
    %v283 = vpop.permute.xlu0 %282
    %vm285 = vcmask 261120
    %v286 = vsel %vm285, %v279, %v283
    %v287 = vld [vmem:[%s5] sm:$0xff]
    %v288 = vld [vmem:[%s5 + $0x8] sm:$0xff]
    %v289 = vld [vmem:[%s5 + $0x10] sm:$0xff]
    %v290 = vld [vmem:[%s5 + $0x18] sm:$0xff]
    %v291 = vld [vmem:[%s5 + $0x20] sm:$0xff]
    %v292 = vld [vmem:[%s5 + $0x28] sm:$0xff]
    %v293 = vld [vmem:[%s5 + $0x30] sm:$0xff]
    %v294 = vld [vmem:[%s5 + $0x38] sm:$0xff]
    %v295 = vlaneseq
    %v296 = vshrl.u32 %v295, 7
    %v297 = vsub.s32 1, %v296
    %v298 = vrot.slane %v80, %v297
    %vm299 = vcmask 523264
    %v301 = vsel %vm299, %v286, 0
    %303 = vmatprep.subr.mxu0 0.0
    %304 = vmatpush1.msra.mxu0 0.0
    %305 = vmatprep.subr.mxu0 0.0
    %306 = vmatpush1.msra.mxu0 0.0
    %307 = vmatprep.subr.mxu0 0.0
    %308 = vmatpush1.msra.mxu0 0.0
    %309 = vmatprep.subr.mxu0 0.0
    %310 = vmatpush1.msra.mxu0 0.0
    %311 = vmatprep.subr.mxu0 0.0
    %312 = vmatpush1.msra.mxu0 0.0
    %313 = vmatprep.subr.mxu0 0.0
    %314 = vmatpush1.msra.mxu0 0.0
    %315 = vmatprep.subr.mxu0 0.0
    %316 = vmatpush1.msra.mxu0 0.0
    %317 = vmatprep.subr.mxu0 0.0
    %318 = vmatpush1.msra.mxu0 0.0
    %319 = vmatprep.subr.mxu0 0.0
    %320 = vmatpush1.msra.mxu0 %v294
    %321 = vmatprep.subr.mxu0 0.0
    %322 = vmatpush1.msra.mxu0 %v293
    %323 = vmatprep.subr.mxu0 0.0
    %324 = vmatpush1.msra.mxu0 %v292
    %325 = vmatprep.subr.mxu0 0.0
    %326 = vmatpush1.msra.mxu0 %v291
    %327 = vmatprep.subr.mxu0 0.0
    %328 = vmatpush1.msra.mxu0 %v290
    %329 = vmatprep.subr.mxu0 0.0
    %330 = vmatpush1.msra.mxu0 %v289
    %331 = vmatprep.subr.mxu0 0.0
    %332 = vmatpush1.msra.mxu0 %v288
    %333 = vmatprep.subr.mxu0 0.0
    %334 = vmatpush1.msra.mxu0 %v287
    %335 = vmatprep.subr.mxu0 0.0
    %336 = vmatpush2.msra.mxu0 0.0
    %337 = vmatprep.subr.mxu0 0.0
    %338 = vmatpush2.msra.mxu0 0.0
    %339 = vmatprep.subr.mxu0 0.0
    %340 = vmatpush2.msra.mxu0 0.0
    %341 = vmatprep.subr.mxu0 0.0
    %342 = vmatpush2.msra.mxu0 0.0
    %343 = vmatprep.subr.mxu0 0.0
    %344 = vmatpush2.msra.mxu0 0.0
    %345 = vmatprep.subr.mxu0 0.0
    %346 = vmatpush2.msra.mxu0 0.0
    %347 = vmatprep.subr.mxu0 0.0
    %348 = vmatpush2.msra.mxu0 0.0
    %349 = vmatprep.subr.mxu0 0.0
    %350 = vmatpush2.msra.mxu0 0.0
    %351 = vmatprep.subr.mxu0 0.0
    %352 = vmatpush2.msra.mxu0 0.0
    %353 = vmatprep.subr.mxu0 0.0
    %354 = vmatpush2.msra.mxu0 0.0
    %355 = vmatprep.subr.mxu0 0.0
    %356 = vmatpush2.msra.mxu0 0.0
    %357 = vmatprep.subr.mxu0 0.0
    %358 = vmatpush2.msra.mxu0 0.0
    %359 = vmatprep.subr.mxu0 0.0
    %360 = vmatpush2.msra.mxu0 0.0
    %361 = vmatprep.subr.mxu0 0.0
    %362 = vmatpush2.msra.mxu0 0.0
    %363 = vmatprep.subr.mxu0 0.0
    %364 = vmatpush2.msra.mxu0 0.0
    %365 = vmatprep.subr.mxu0 0.0
    %366 = vmatpush2.msra.mxu0 0.0
    %367 = vmatprep.mubr.f32.mxu0 0.0
    %368 = vmatmul.mubr.f32.gmra.mxu0 %v301
    %v369 = vpop.f32.mrf.mxu0
    %v370 = vadd.f32 %v298, %v369
    %v371 = vpop.f32.mrf.mxu0
    %372 = vdwg.mxu0
    %v373 = vxor.u32 %v370, 2147483648
    %v374 = vmul.f32 %v373, 1.442695
    %v375 = vpow.pop %v374
    %v376 = vadd.f32 %v375, 1.0
    %v377 = vrcp.pop %v376
    %v378 = vmul.f32 1.0, %v377
    %v379 = vtanh.pop %v370
    %v380 = vmul.f32 %v378, %v269
    %382 = vrot.lane.b32.xlu0 %v379, 64
    %v383 = vpop.permute.xlu0 %382
    %v385 = vmul.f32 %v378, %v383
    %387 = vrot.lane.b32.xlu0 %v385, 32
    %v388 = vpop.permute.xlu0 %387
    %v390 = vadd.f32 %v380, %v388
    %v391 = vtanh.pop %v390
    %393 = vrot.lane.b32.xlu0 %v391, 64
    %v394 = vpop.permute.xlu0 %393
    %v396 = vmul.f32 %v378, %v394
    %v397 = vld [vmem:[%s6] sm:$0xff]
    %v398 = vld [vmem:[%s6 + $0x8] sm:$0xff]
    %v399 = vld [vmem:[%s6 + $0x10] sm:$0xff]
    %v400 = vld [vmem:[%s6 + $0x18] sm:$0xff]
    %v401 = vlaneseq
    %v402 = vshrl.u32 %v401, 7
    %v403 = vsub.s32 2, %v402
    %v404 = vrot.slane %v80, %v403
    %406 = vrot.lane.b32.xlu0 %v396, 32
    %v407 = vpop.permute.xlu0 %406
    %v408 = vsel %vm285, %v407, 0
    %410 = vmatprep.subr.mxu0 0.0
    %411 = vmatpush1.msra.mxu0 0.0
    %412 = vmatprep.subr.mxu0 0.0
    %413 = vmatpush1.msra.mxu0 0.0
    %414 = vmatprep.subr.mxu0 0.0
    %415 = vmatpush1.msra.mxu0 0.0
    %416 = vmatprep.subr.mxu0 0.0
    %417 = vmatpush1.msra.mxu0 0.0
    %418 = vmatprep.subr.mxu0 0.0
    %419 = vmatpush1.msra.mxu0 0.0
    %420 = vmatprep.subr.mxu0 0.0
    %421 = vmatpush1.msra.mxu0 0.0
    %422 = vmatprep.subr.mxu0 0.0
    %423 = vmatpush1.msra.mxu0 0.0
    %424 = vmatprep.subr.mxu0 0.0
    %425 = vmatpush1.msra.mxu0 0.0
    %426 = vmatprep.subr.mxu0 0.0
    %427 = vmatpush1.msra.mxu0 0.0
    %428 = vmatprep.subr.mxu0 0.0
    %429 = vmatpush1.msra.mxu0 0.0
    %430 = vmatprep.subr.mxu0 0.0
    %431 = vmatpush1.msra.mxu0 0.0
    %432 = vmatprep.subr.mxu0 0.0
    %433 = vmatpush1.msra.mxu0 0.0
    %434 = vmatprep.subr.mxu0 0.0
    %435 = vmatpush1.msra.mxu0 %v400
    %436 = vmatprep.subr.mxu0 0.0
    %437 = vmatpush1.msra.mxu0 %v399
    %438 = vmatprep.subr.mxu0 0.0
    %439 = vmatpush1.msra.mxu0 %v398
    %440 = vmatprep.subr.mxu0 0.0
    %441 = vmatpush1.msra.mxu0 %v397
    %442 = vmatprep.subr.mxu0 0.0
    %443 = vmatpush2.msra.mxu0 0.0
    %444 = vmatprep.subr.mxu0 0.0
    %445 = vmatpush2.msra.mxu0 0.0
    %446 = vmatprep.subr.mxu0 0.0
    %447 = vmatpush2.msra.mxu0 0.0
    %448 = vmatprep.subr.mxu0 0.0
    %449 = vmatpush2.msra.mxu0 0.0
    %450 = vmatprep.subr.mxu0 0.0
    %451 = vmatpush2.msra.mxu0 0.0
    %452 = vmatprep.subr.mxu0 0.0
    %453 = vmatpush2.msra.mxu0 0.0
    %454 = vmatprep.subr.mxu0 0.0
    %455 = vmatpush2.msra.mxu0 0.0
    %456 = vmatprep.subr.mxu0 0.0
    %457 = vmatpush2.msra.mxu0 0.0
    %458 = vmatprep.subr.mxu0 0.0
    %459 = vmatpush2.msra.mxu0 0.0
    %460 = vmatprep.subr.mxu0 0.0
    %461 = vmatpush2.msra.mxu0 0.0
    %462 = vmatprep.subr.mxu0 0.0
    %463 = vmatpush2.msra.mxu0 0.0
    %464 = vmatprep.subr.mxu0 0.0
    %465 = vmatpush2.msra.mxu0 0.0
    %466 = vmatprep.subr.mxu0 0.0
    %467 = vmatpush2.msra.mxu0 0.0
    %468 = vmatprep.subr.mxu0 0.0
    %469 = vmatpush2.msra.mxu0 0.0
    %470 = vmatprep.subr.mxu0 0.0
    %471 = vmatpush2.msra.mxu0 0.0
    %472 = vmatprep.subr.mxu0 0.0
    %473 = vmatpush2.msra.mxu0 0.0
    %474 = vmatprep.mubr.f32.mxu0 0.0
    %475 = vmatmul.mubr.f32.gmra.mxu0 %v408
    %v476 = vpop.f32.mrf.mxu0
    %v477 = vadd.f32 %v404, %v476
    %v478 = vpop.f32.mrf.mxu0
    %479 = vdwg.mxu0
    %v480 = vsel %vm166, %v477, -inf
    %481 = vmax.xlane.f32.xlu0 %v480
    %v482 = vpop.xlane.xlu0 %481
    %v483 = vsub.f32 %v477, %v482
    %v484 = vmul.f32 %v483, 1.442695
    %v485 = vpow.pop %v484
    %v486 = vsel %vm166, %v485, 0.0
    %487 = vadd.xlane.f32.xlu0 %v486
    %v488 = vpop.xlane.xlu0 %487
    %v489 = vlog2.pop %v488
    %v490 = vmul.f32 %v489, 0.6931472
    %v491 = vsub.f32 %v483, %v490
    %492 = vrot.lane.b32.xlu0 %v396, 48
    %v493 = vpop.permute.xlu0 %492
    %496 = vrot.lane.b32.xlu0 %v390, 16
    %v497 = vpop.permute.xlu0 %496
    %v499 = vsel %vm166, %v491, %v493
    %v500 = vsel %vm178, %v499, %v497
    %vm501 = vcmask 654336
    %v502 = vsel %vm501, %v500, 0.0
    %503 = vst [vmem:[%s8] sm:$0xff] %v502
    // Predicated region
    $region50: #{model_forward.1} parent=1 // pred_check
      _
    $region51: #{model_forward.1} parent=1 // pred_check_branch
      %505 = sbr.rel (0) target = $region53
    $region52: #{model_forward.1} parent=1 // pred_region
      _
    $region53: #{model_forward.1} parent=1 // pred_fallthru
      _
    // Predicated region
    $region54: #{model_forward.1} parent=1 // pred_check
      _
    $region55: #{model_forward.1} parent=1 // pred_check_branch
      %507 = sbr.rel (0) target = $region57
    $region56: #{model_forward.1} parent=1 // pred_region
      _
    $region57: #{model_forward.1} parent=1 // pred_fallthru
      _
    %508 = vsyncpa [#allocation3], 1
    %509 = vsyncpa [#allocation5], 1
    %510 = vsyncpa [#allocation8], 1

</llo_original>
